<compile_context>
chip_gen: v7x
topology: tpu7x:2x2x1
jax: 0.10.0
libtpu: 0.0.40
codegen_flags: <defaults>
</compile_context>

<pallas_src>
import functools

import jax
import jax.numpy as jnp
from jax.experimental import pallas as pl
from jax.experimental.pallas import tpu as pltpu


# ----------------------------- Pallas kernel ------------------------------- #

def mlp_relu_kernel(x_ref, *args):
    """Fused MLP: for each layer, h = relu(h @ W + b); all layers in one kernel.

    args = (w0, b0, w1, b1, ..., w_{L-1}, b_{L-1}, o_ref)
      x:  (bb, d_in)        batch tile
      wi: (d_in_i, d_out_i) full weight (already transposed from torch's (out,in))
      bi: (1, d_out_i)
      o:  (bb, d_out_last)
    """
    o_ref = args[-1]
    w_refs = args[0:-1:2]
    b_refs = args[1:-1:2]

    h = x_ref[...]
    for w_ref, b_ref in zip(w_refs, b_refs):
        h = jnp.dot(h, w_ref[...], preferred_element_type=jnp.float32) + b_ref[...]
        h = jnp.maximum(h, 0.0)                     # ReLU after every layer (incl. last)
    o_ref[...] = h.astype(o_ref.dtype)


# --------------------------- pallas_call wrapper ---------------------------- #

def property_predictor_forward(x, layers, *, block_b=128):
    """x: (B, d_latent) f32; layers: list of (W:(din,dout), b:(1,dout)) f32."""
    B, d_in = x.shape
    d_out = layers[-1][0].shape[1]

    bb = B if B <= block_b else block_b             # batch tile
    grid = (pl.cdiv(B, bb),)

    in_specs = [pl.BlockSpec((bb, d_in), lambda i: (i, 0))]
    flat_params = []
    for (w, b) in layers:
        in_specs.append(pl.BlockSpec(w.shape, lambda i: (0, 0)))   # full weight, resident
        in_specs.append(pl.BlockSpec(b.shape, lambda i: (0, 0)))
        flat_params += [w, b]

    out_spec = pl.BlockSpec((bb, d_out), lambda i: (i, 0))

    return pl.pallas_call(
        mlp_relu_kernel,
        out_shape=jax.ShapeDtypeStruct((B, d_out), jnp.float32),
        grid=grid,
        in_specs=in_specs,
        out_specs=out_spec,
        compiler_params=pltpu.CompilerParams(
            dimension_semantics=("parallel",)),      # megacore batch split on v7x
    )(x, *flat_params)


# ------------------------------ init / reference ---------------------------- #

def init_params(key, *, d_pp, depth_pp, d_latent):
    """Matches nn.Linear default init: U(-1/sqrt(fan_in), 1/sqrt(fan_in))."""
    keys = jax.random.split(key, 2 * depth_pp)
    layers = []
    for i in range(depth_pp):
        if i == 0:
            din, dout = d_latent, d_pp
        elif i == depth_pp - 1:
            din, dout = d_pp, 1
        else:
            din, dout = d_pp, d_pp
        s = 1.0 / float(din) ** 0.5
        w = jax.random.uniform(keys[2 * i], (din, dout), jnp.float32, -s, s)
        b = jax.random.uniform(keys[2 * i + 1], (1, dout), jnp.float32, -s, s)
        layers.append((w, b))
    return layers


def reference_forward(x, layers):
    h = x
    for (w, b) in layers:
        h = jnp.maximum(h @ w + b, 0.0)
    return h


# ----------------------------------- main ----------------------------------- #

if __name__ == "__main__":
    B = 8
    d_latent = 32
    d_pp = 64
    depth_pp = 3

    key = jax.random.PRNGKey(0)
    k_x, k_p = jax.random.split(key)
    x = jax.random.normal(k_x, (B, d_latent), jnp.float32)
    layers = init_params(k_p, d_pp=d_pp, depth_pp=depth_pp, d_latent=d_latent)

    fwd = jax.jit(functools.partial(property_predictor_forward))
    y = fwd(x, layers)
    jax.block_until_ready(y)

    assert y.shape == (B, 1), y.shape
    y_ref = reference_forward(x, layers)
    assert jnp.all(jnp.isfinite(y))
    assert jnp.allclose(y, y_ref, rtol=1e-5, atol=1e-5), (
        float(jnp.max(jnp.abs(y - y_ref))))
    print("KERNEL_OK")
</pallas_src>

<mosaic_0001>
module attributes {stable_mosaic.version = 11 : i64} {
  func.func @mlp_relu_kernel(%arg0: i32, %arg1: memref<8x32xf32, #tpu.memory_space<vmem>>, %arg2: memref<32x64xf32, #tpu.memory_space<vmem>>, %arg3: memref<1x64xf32, #tpu.memory_space<vmem>>, %arg4: memref<64x64xf32, #tpu.memory_space<vmem>>, %arg5: memref<1x64xf32, #tpu.memory_space<vmem>>, %arg6: memref<64x1xf32, #tpu.memory_space<vmem>>, %arg7: memref<1x1xf32, #tpu.memory_space<vmem>>, %arg8: memref<8x1xf32, #tpu.memory_space<vmem>>) attributes {dimension_semantics = [#tpu.dimension_semantics<parallel>], iteration_bounds = array<i64: 1>, scalar_prefetch = 0 : i64, scratch_operands = 0 : i64, tpu.core_type = #tpu.core_type<tc>, window_params = [{transform_indices = @transform_0, window_bounds = array<i64: 8, 32>}, {pipeline_mode = #tpu.pipeline_mode<synchronous>, transform_indices = @transform_1, window_bounds = array<i64: 32, 64>}, {pipeline_mode = #tpu.pipeline_mode<synchronous>, transform_indices = @transform_2, window_bounds = array<i64: 1, 64>}, {pipeline_mode = #tpu.pipeline_mode<synchronous>, transform_indices = @transform_3, window_bounds = array<i64: 64, 64>}, {pipeline_mode = #tpu.pipeline_mode<synchronous>, transform_indices = @transform_4, window_bounds = array<i64: 1, 64>}, {pipeline_mode = #tpu.pipeline_mode<synchronous>, transform_indices = @transform_5, window_bounds = array<i64: 64, 1>}, {pipeline_mode = #tpu.pipeline_mode<synchronous>, transform_indices = @transform_6, window_bounds = array<i64: 1, 1>}, {transform_indices = @transform_7, window_bounds = array<i64: 8, 1>}]} {
    %c0 = arith.constant 0 : index
    %c0_0 = arith.constant 0 : index
    %0 = vector.load %arg1[%c0, %c0_0] : memref<8x32xf32, #tpu.memory_space<vmem>>, vector<8x32xf32>
    %c0_1 = arith.constant 0 : index
    %c0_2 = arith.constant 0 : index
    %1 = vector.load %arg2[%c0_1, %c0_2] : memref<32x64xf32, #tpu.memory_space<vmem>>, vector<32x64xf32>
    %cst = arith.constant dense<0.000000e+00> : vector<8x64xf32>
    %2 = tpu.matmul %0, %1, %cst {dimension_numbers = #tpu.dot_dimension_numbers<[1], [0], [0], [1], [0, 0, 1, 1], [], []>} : vector<8x32xf32>, vector<32x64xf32>, vector<8x64xf32> -> vector<8x64xf32>
    %c0_3 = arith.constant 0 : index
    %c0_4 = arith.constant 0 : index
    %3 = vector.load %arg3[%c0_3, %c0_4] : memref<1x64xf32, #tpu.memory_space<vmem>>, vector<1x64xf32>
    %4 = vector.broadcast %3 : vector<1x64xf32> to vector<8x64xf32>
    %5 = arith.addf %2, %4 : vector<8x64xf32>
    %cst_5 = arith.constant 0.000000e+00 : f32
    %6 = vector.broadcast %cst_5 : f32 to vector<8x64xf32>
    %7 = arith.maximumf %5, %6 : vector<8x64xf32>
    %c0_6 = arith.constant 0 : index
    %c0_7 = arith.constant 0 : index
    %8 = vector.load %arg4[%c0_6, %c0_7] : memref<64x64xf32, #tpu.memory_space<vmem>>, vector<64x64xf32>
    %cst_8 = arith.constant dense<0.000000e+00> : vector<8x64xf32>
    %9 = tpu.matmul %7, %8, %cst_8 {dimension_numbers = #tpu.dot_dimension_numbers<[1], [0], [0], [1], [0, 0, 1, 1], [], []>} : vector<8x64xf32>, vector<64x64xf32>, vector<8x64xf32> -> vector<8x64xf32>
    %c0_9 = arith.constant 0 : index
    %c0_10 = arith.constant 0 : index
    %10 = vector.load %arg5[%c0_9, %c0_10] : memref<1x64xf32, #tpu.memory_space<vmem>>, vector<1x64xf32>
    %11 = vector.broadcast %10 : vector<1x64xf32> to vector<8x64xf32>
    %12 = arith.addf %9, %11 : vector<8x64xf32>
    %cst_11 = arith.constant 0.000000e+00 : f32
    %13 = vector.broadcast %cst_11 : f32 to vector<8x64xf32>
    %14 = arith.maximumf %12, %13 : vector<8x64xf32>
    %c0_12 = arith.constant 0 : index
    %c0_13 = arith.constant 0 : index
    %15 = vector.load %arg6[%c0_12, %c0_13] : memref<64x1xf32, #tpu.memory_space<vmem>>, vector<64x1xf32>
    %cst_14 = arith.constant dense<0.000000e+00> : vector<8x1xf32>
    %16 = tpu.matmul %14, %15, %cst_14 {dimension_numbers = #tpu.dot_dimension_numbers<[1], [0], [0], [1], [0, 0, 1, 1], [], []>} : vector<8x64xf32>, vector<64x1xf32>, vector<8x1xf32> -> vector<8x1xf32>
    %c0_15 = arith.constant 0 : index
    %c0_16 = arith.constant 0 : index
    %17 = vector.load %arg7[%c0_15, %c0_16] : memref<1x1xf32, #tpu.memory_space<vmem>>, vector<1x1xf32>
    %18 = vector.broadcast %17 : vector<1x1xf32> to vector<8x1xf32>
    %19 = arith.addf %16, %18 : vector<8x1xf32>
    %cst_17 = arith.constant 0.000000e+00 : f32
    %20 = vector.broadcast %cst_17 : f32 to vector<8x1xf32>
    %21 = arith.maximumf %19, %20 : vector<8x1xf32>
    %c0_18 = arith.constant 0 : index
    %c0_19 = arith.constant 0 : index
    %22 = vector.load %arg8[%c0_18, %c0_19] : memref<8x1xf32, #tpu.memory_space<vmem>>, vector<8x1xf32>
    tpu.vector_store %arg8[%c0_18, %c0_19], %21 {strides = array<i32>} : memref<8x1xf32, #tpu.memory_space<vmem>>, vector<8x1xf32>,
    return
  }
  func.func @transform_0(%arg0: i32) -> (i32, i32) {
    %c0_i32 = arith.constant 0 : i32
    %c0_i32_0 = arith.constant 0 : i32
    return %arg0, %c0_i32 : i32, i32
  }
  func.func @transform_1(%arg0: i32) -> (i32, i32) {
    %c0_i32 = arith.constant 0 : i32
    %c0_i32_0 = arith.constant 0 : i32
    %c0_i32_1 = arith.constant 0 : i32
    return %c0_i32, %c0_i32_0 : i32, i32
  }
  func.func @transform_2(%arg0: i32) -> (i32, i32) {
    %c0_i32 = arith.constant 0 : i32
    %c0_i32_0 = arith.constant 0 : i32
    %c0_i32_1 = arith.constant 0 : i32
    return %c0_i32, %c0_i32_0 : i32, i32
  }
  func.func @transform_3(%arg0: i32) -> (i32, i32) {
    %c0_i32 = arith.constant 0 : i32
    %c0_i32_0 = arith.constant 0 : i32
    %c0_i32_1 = arith.constant 0 : i32
    return %c0_i32, %c0_i32_0 : i32, i32
  }
  func.func @transform_4(%arg0: i32) -> (i32, i32) {
    %c0_i32 = arith.constant 0 : i32
    %c0_i32_0 = arith.constant 0 : i32
    %c0_i32_1 = arith.constant 0 : i32
    return %c0_i32, %c0_i32_0 : i32, i32
  }
  func.func @transform_5(%arg0: i32) -> (i32, i32) {
    %c0_i32 = arith.constant 0 : i32
    %c0_i32_0 = arith.constant 0 : i32
    %c0_i32_1 = arith.constant 0 : i32
    return %c0_i32, %c0_i32_0 : i32, i32
  }
  func.func @transform_6(%arg0: i32) -> (i32, i32) {
    %c0_i32 = arith.constant 0 : i32
    %c0_i32_0 = arith.constant 0 : i32
    %c0_i32_1 = arith.constant 0 : i32
    return %c0_i32, %c0_i32_0 : i32, i32
  }
  func.func @transform_7(%arg0: i32) -> (i32, i32) {
    %c0_i32 = arith.constant 0 : i32
    %c0_i32_0 = arith.constant 0 : i32
    return %arg0, %c0_i32 : i32, i32
  }
}

</mosaic_0001>

<llo_original>
// kernel: property_predictor_forward.1
$region0: #{property_predictor_forward.1}
  #allocation0 [shape = 'u32[]', space=smem, size = 0x4, offset = 0x4, fixed_abs, tag = 'smem constant byte address 0x4 - core index']
  #allocation1 [shape = 'u32[144,128]{1,0:T(1,128)}', space=vmem, size = 0x12000, scoped, tag = 'internal scratch']
  #allocation2 [shape = 'f32[1,1]{1,0:T(1,128)S(1)}', space=vmem, size = 0x200, scoped, tag = 'scoped memory for property_predictor_forward.1']
  %s0 = inlined_call_operand.vmem [shape: f32[8,32], index: 0, kind: input, shape index: {}]
  %s1 = inlined_call_operand.hbm [shape: f32[32,64], index: 1, kind: input, shape index: {}]
  %s2 = inlined_call_operand.vmem [shape: f32[1,64], index: 2, kind: input, shape index: {}]
  %s3 = inlined_call_operand.vmem [shape: f32[64,64], index: 3, kind: input, shape index: {}]
  %s4 = inlined_call_operand.vmem [shape: f32[1,64], index: 4, kind: input, shape index: {}]
  %s5 = inlined_call_operand.vmem [shape: f32[64,1], index: 5, kind: input, shape index: {}]
  %s6 = inlined_call_operand.<no memory space> [shape: f32[1,1], index: 6, kind: input, shape index: {}]
  %s7 = inlined_call_operand.vmem [shape: f32[8,1], index: 7, kind: output, shape index: {}]
  %s8 = sld [smem:[#allocation0]]
  $region42: #{property_predictor_forward.1} parent=0
    _
  %s10 = ssub.s32 1, %s8
  %s11 = scalar_select 0, %s10, %s8
  %v12 = vstv %s6
  %13 = vst [vmem:[#allocation2] sm:$0x1] %v12
  $region1: #{property_predictor_forward.1} parent=0
    #allocation3 [shape = 'u8[16384]{0}', space=vmem, size = 0x4000, scoped, tag = 'input window, operand 1, single buffered']
    #allocation4 [shape = 's32[1]{0}', space=sflag, size = 0x4, scoped, tag = 'scoped memory for property_predictor_forward.1']
    %14 = vsyncpa [#allocation4], 0
    // Predicated region
    $region2: #{property_predictor_forward.1} parent=1 // pred_check
      _
    $region3: #{property_predictor_forward.1} parent=1 // pred_check_branch
      %16 = sbr.rel (0) target = $region5
    $region4: #{property_predictor_forward.1} parent=1 // pred_region
      _
    $region5: #{property_predictor_forward.1} parent=1 // pred_fallthru
      _
    // Predicated region
    $region6: #{property_predictor_forward.1} parent=1 // pred_check
      _
    $region7: #{property_predictor_forward.1} parent=1 // pred_check_branch
      %18 = sbr.rel (0) target = $region9
    $region8: #{property_predictor_forward.1} parent=1 // pred_region
      %s20 = ssub.s32 512, 512
      %21 = vsyncadd [#allocation4], %s20
      %s22 = sshll.u32 [#allocation3], 4
      %s23 = int_to_ptr.vmem [resolvable:$true] %s22
      %28 = dma.hbm_to_vmem [thread:$0]  %s1, 512, %s23, [#allocation4], 128, 128, 8
    $region9: #{property_predictor_forward.1} parent=1 // pred_fallthru
      _
    // Predicated region
    $region10: #{property_predictor_forward.1} parent=1 // pred_check
      _
    $region11: #{property_predictor_forward.1} parent=1 // pred_check_branch
      %30 = sbr.rel (0) target = $region13
    $region12: #{property_predictor_forward.1} parent=1 // pred_region
      _
    $region13: #{property_predictor_forward.1} parent=1 // pred_fallthru
      _
    // Predicated region
    $region14: #{property_predictor_forward.1} parent=1 // pred_check
      _
    $region15: #{property_predictor_forward.1} parent=1 // pred_check_branch
      %32 = sbr.rel (0) target = $region17
    $region16: #{property_predictor_forward.1} parent=1 // pred_region
      _
    $region17: #{property_predictor_forward.1} parent=1 // pred_fallthru
      _
    // Predicated region
    $region18: #{property_predictor_forward.1} parent=1 // pred_check
      _
    $region19: #{property_predictor_forward.1} parent=1 // pred_check_branch
      %34 = sbr.rel (0) target = $region21
    $region20: #{property_predictor_forward.1} parent=1 // pred_region
      _
    $region21: #{property_predictor_forward.1} parent=1 // pred_fallthru
      _
    // Predicated region
    $region22: #{property_predictor_forward.1} parent=1 // pred_check
      _
    $region23: #{property_predictor_forward.1} parent=1 // pred_check_branch
      %36 = sbr.rel (0) target = $region25
    $region24: #{property_predictor_forward.1} parent=1 // pred_region
      _
    $region25: #{property_predictor_forward.1} parent=1 // pred_fallthru
      _
    // Predicated region
    $region26: #{property_predictor_forward.1} parent=1 // pred_check
      _
    $region27: #{property_predictor_forward.1} parent=1 // pred_check_branch
      %38 = sbr.rel (0) target = $region29
    $region28: #{property_predictor_forward.1} parent=1 // pred_region
      _
    $region29: #{property_predictor_forward.1} parent=1 // pred_fallthru
      _
    // Predicated region
    $region30: #{property_predictor_forward.1} parent=1 // pred_check
      _
    $region31: #{property_predictor_forward.1} parent=1 // pred_check_branch
      %40 = sbr.rel (0) target = $region33
    $region32: #{property_predictor_forward.1} parent=1 // pred_region
      %41 = dma.done [#allocation4], 512
    $region33: #{property_predictor_forward.1} parent=1 // pred_fallthru
      _
    %v42 = vld [vmem:[%s0] sm:$0xff]
    %v43 = vld [vmem:[#allocation3] sm:$0xff]
    %v44 = vld [vmem:[#allocation3 + $0x8] sm:$0xff]
    %v45 = vld [vmem:[#allocation3 + $0x10] sm:$0xff]
    %v46 = vld [vmem:[#allocation3 + $0x18] sm:$0xff]
    %v47 = vld [vmem:[%s2] sm:$0x1]
    %v49 = vlaneseq
    %v50 = vshrl.u32 %v49, 7
    %v51 = vsub.s32 0, %v50
    %v52 = vrot.slane %v47, %v51
    %vm54 = vcmask 261120
    %v56 = vsel %vm54, %v42, 0
    %58 = vmatprep.subr.mxu0 0.0
    %59 = vmatpush1.msra.mxu0 %v43
    %60 = vmatprep.subr.mxu0 0.0
    %61 = vmatpush1.msra.mxu0 %v44
    %62 = vmatprep.subr.mxu0 0.0
    %63 = vmatpush1.msra.mxu0 %v45
    %64 = vmatprep.subr.mxu0 0.0
    %65 = vmatpush1.msra.mxu0 %v46
    %66 = vmatprep.subr.mxu0 0.0
    %67 = vmatpush1.msra.mxu0 0.0
    %68 = vmatprep.subr.mxu0 0.0
    %69 = vmatpush1.msra.mxu0 0.0
    %70 = vmatprep.subr.mxu0 0.0
    %71 = vmatpush1.msra.mxu0 0.0
    %72 = vmatprep.subr.mxu0 0.0
    %73 = vmatpush1.msra.mxu0 0.0
    %74 = vmatprep.subr.mxu0 0.0
    %75 = vmatpush1.msra.mxu0 0.0
    %76 = vmatprep.subr.mxu0 0.0
    %77 = vmatpush1.msra.mxu0 0.0
    %78 = vmatprep.subr.mxu0 0.0
    %79 = vmatpush1.msra.mxu0 0.0
    %80 = vmatprep.subr.mxu0 0.0
    %81 = vmatpush1.msra.mxu0 0.0
    %82 = vmatprep.subr.mxu0 0.0
    %83 = vmatpush1.msra.mxu0 0.0
    %84 = vmatprep.subr.mxu0 0.0
    %85 = vmatpush1.msra.mxu0 0.0
    %86 = vmatprep.subr.mxu0 0.0
    %87 = vmatpush1.msra.mxu0 0.0
    %88 = vmatprep.subr.mxu0 0.0
    %89 = vmatpush1.msra.mxu0 0.0
    %90 = vmatprep.subr.mxu0 0.0
    %91 = vmatpush1.msra.mxu0 0.0
    %92 = vmatprep.subr.mxu0 0.0
    %93 = vmatpush1.msra.mxu0 0.0
    %94 = vmatprep.subr.mxu0 0.0
    %95 = vmatpush1.msra.mxu0 0.0
    %96 = vmatprep.subr.mxu0 0.0
    %97 = vmatpush1.msra.mxu0 0.0
    %98 = vmatprep.subr.mxu0 0.0
    %99 = vmatpush1.msra.mxu0 0.0
    %100 = vmatprep.subr.mxu0 0.0
    %101 = vmatpush1.msra.mxu0 0.0
    %102 = vmatprep.subr.mxu0 0.0
    %103 = vmatpush1.msra.mxu0 0.0
    %104 = vmatprep.subr.mxu0 0.0
    %105 = vmatpush1.msra.mxu0 0.0
    %106 = vmatprep.subr.mxu0 0.0
    %107 = vmatpush1.msra.mxu0 0.0
    %108 = vmatprep.subr.mxu0 0.0
    %109 = vmatpush1.msra.mxu0 0.0
    %110 = vmatprep.subr.mxu0 0.0
    %111 = vmatpush1.msra.mxu0 0.0
    %112 = vmatprep.subr.mxu0 0.0
    %113 = vmatpush1.msra.mxu0 0.0
    %114 = vmatprep.subr.mxu0 0.0
    %115 = vmatpush1.msra.mxu0 0.0
    %116 = vmatprep.subr.mxu0 0.0
    %117 = vmatpush1.msra.mxu0 0.0
    %118 = vmatprep.subr.mxu0 0.0
    %119 = vmatpush1.msra.mxu0 0.0
    %120 = vmatprep.subr.mxu0 0.0
    %121 = vmatpush1.msra.mxu0 0.0
    %122 = vmatprep.mubr.f32.mxu0 0.0
    %123 = vmatmul.mubr.f32.gmra.mrb[0].mxu0 %v56
    %v124 = vpop.f32.mrb[0].mxu0
    %v125 = vadd.f32 %v52, %v124
    %v126 = vpop.f32.mrb[0].mxu0
    %127 = vdwg.mxu0
    %v128 = vmax.f32 %v125, 0.0
    %v129 = vld [vmem:[%s3] sm:$0xff]
    %v130 = vld [vmem:[%s3 + $0x8] sm:$0xff]
    %v131 = vld [vmem:[%s3 + $0x10] sm:$0xff]
    %v132 = vld [vmem:[%s3 + $0x18] sm:$0xff]
    %v133 = vld [vmem:[%s3 + $0x20] sm:$0xff]
    %v134 = vld [vmem:[%s3 + $0x28] sm:$0xff]
    %v135 = vld [vmem:[%s3 + $0x30] sm:$0xff]
    %v136 = vld [vmem:[%s3 + $0x38] sm:$0xff]
    %v137 = vld [vmem:[%s4] sm:$0x1]
    %v139 = vlaneseq
    %v140 = vshrl.u32 %v139, 7
    %v141 = vsub.s32 0, %v140
    %v142 = vrot.slane %v137, %v141
    %vm144 = vcmask 523264
    %v146 = vsel %vm144, %v128, 0
    %148 = vmatprep.subr.mxu0 0.0
    %149 = vmatpush1.msra.mxu0 %v129
    %150 = vmatprep.subr.mxu0 0.0
    %151 = vmatpush1.msra.mxu0 %v130
    %152 = vmatprep.subr.mxu0 0.0
    %153 = vmatpush1.msra.mxu0 %v131
    %154 = vmatprep.subr.mxu0 0.0
    %155 = vmatpush1.msra.mxu0 %v132
    %156 = vmatprep.subr.mxu0 0.0
    %157 = vmatpush1.msra.mxu0 %v133
    %158 = vmatprep.subr.mxu0 0.0
    %159 = vmatpush1.msra.mxu0 %v134
    %160 = vmatprep.subr.mxu0 0.0
    %161 = vmatpush1.msra.mxu0 %v135
    %162 = vmatprep.subr.mxu0 0.0
    %163 = vmatpush1.msra.mxu0 %v136
    %164 = vmatprep.subr.mxu0 0.0
    %165 = vmatpush1.msra.mxu0 0.0
    %166 = vmatprep.subr.mxu0 0.0
    %167 = vmatpush1.msra.mxu0 0.0
    %168 = vmatprep.subr.mxu0 0.0
    %169 = vmatpush1.msra.mxu0 0.0
    %170 = vmatprep.subr.mxu0 0.0
    %171 = vmatpush1.msra.mxu0 0.0
    %172 = vmatprep.subr.mxu0 0.0
    %173 = vmatpush1.msra.mxu0 0.0
    %174 = vmatprep.subr.mxu0 0.0
    %175 = vmatpush1.msra.mxu0 0.0
    %176 = vmatprep.subr.mxu0 0.0
    %177 = vmatpush1.msra.mxu0 0.0
    %178 = vmatprep.subr.mxu0 0.0
    %179 = vmatpush1.msra.mxu0 0.0
    %180 = vmatprep.subr.mxu0 0.0
    %181 = vmatpush1.msra.mxu0 0.0
    %182 = vmatprep.subr.mxu0 0.0
    %183 = vmatpush1.msra.mxu0 0.0
    %184 = vmatprep.subr.mxu0 0.0
    %185 = vmatpush1.msra.mxu0 0.0
    %186 = vmatprep.subr.mxu0 0.0
    %187 = vmatpush1.msra.mxu0 0.0
    %188 = vmatprep.subr.mxu0 0.0
    %189 = vmatpush1.msra.mxu0 0.0
    %190 = vmatprep.subr.mxu0 0.0
    %191 = vmatpush1.msra.mxu0 0.0
    %192 = vmatprep.subr.mxu0 0.0
    %193 = vmatpush1.msra.mxu0 0.0
    %194 = vmatprep.subr.mxu0 0.0
    %195 = vmatpush1.msra.mxu0 0.0
    %196 = vmatprep.subr.mxu0 0.0
    %197 = vmatpush1.msra.mxu0 0.0
    %198 = vmatprep.subr.mxu0 0.0
    %199 = vmatpush1.msra.mxu0 0.0
    %200 = vmatprep.subr.mxu0 0.0
    %201 = vmatpush1.msra.mxu0 0.0
    %202 = vmatprep.subr.mxu0 0.0
    %203 = vmatpush1.msra.mxu0 0.0
    %204 = vmatprep.subr.mxu0 0.0
    %205 = vmatpush1.msra.mxu0 0.0
    %206 = vmatprep.subr.mxu0 0.0
    %207 = vmatpush1.msra.mxu0 0.0
    %208 = vmatprep.subr.mxu0 0.0
    %209 = vmatpush1.msra.mxu0 0.0
    %210 = vmatprep.subr.mxu0 0.0
    %211 = vmatpush1.msra.mxu0 0.0
    %212 = vmatprep.mubr.f32.mxu0 0.0
    %213 = vmatmul.mubr.f32.gmra.mrb[0].mxu0 %v146
    %v214 = vpop.f32.mrb[0].mxu0
    %v215 = vadd.f32 %v142, %v214
    %v216 = vpop.f32.mrb[0].mxu0
    %217 = vdwg.mxu0
    %v218 = vmax.f32 %v215, 0.0
    %v219 = vld [vmem:[%s5] sm:$0xff]
    %v220 = vld [vmem:[%s5 + $0x8] sm:$0xff]
    %v221 = vld [vmem:[%s5 + $0x10] sm:$0xff]
    %v222 = vld [vmem:[%s5 + $0x18] sm:$0xff]
    %v223 = vld [vmem:[%s5 + $0x20] sm:$0xff]
    %v224 = vld [vmem:[%s5 + $0x28] sm:$0xff]
    %v225 = vld [vmem:[%s5 + $0x30] sm:$0xff]
    %v226 = vld [vmem:[%s5 + $0x38] sm:$0xff]
    %v227 = vld [vmem:[#allocation2] sm:$0x1]
    %v229 = vlaneseq
    %v230 = vshrl.u32 %v229, 7
    %v231 = vsub.s32 0, %v230
    %v232 = vrot.slane %v227, %v231
    %v235 = vsel %vm144, %v218, 0
    %237 = vmatprep.subr.mxu0 0.0
    %238 = vmatpush1.msra.mxu0 %v219
    %239 = vmatprep.subr.mxu0 0.0
    %240 = vmatpush1.msra.mxu0 %v220
    %241 = vmatprep.subr.mxu0 0.0
    %242 = vmatpush1.msra.mxu0 %v221
    %243 = vmatprep.subr.mxu0 0.0
    %244 = vmatpush1.msra.mxu0 %v222
    %245 = vmatprep.subr.mxu0 0.0
    %246 = vmatpush1.msra.mxu0 %v223
    %247 = vmatprep.subr.mxu0 0.0
    %248 = vmatpush1.msra.mxu0 %v224
    %249 = vmatprep.subr.mxu0 0.0
    %250 = vmatpush1.msra.mxu0 %v225
    %251 = vmatprep.subr.mxu0 0.0
    %252 = vmatpush1.msra.mxu0 %v226
    %253 = vmatprep.subr.mxu0 0.0
    %254 = vmatpush1.msra.mxu0 0.0
    %255 = vmatprep.subr.mxu0 0.0
    %256 = vmatpush1.msra.mxu0 0.0
    %257 = vmatprep.subr.mxu0 0.0
    %258 = vmatpush1.msra.mxu0 0.0
    %259 = vmatprep.subr.mxu0 0.0
    %260 = vmatpush1.msra.mxu0 0.0
    %261 = vmatprep.subr.mxu0 0.0
    %262 = vmatpush1.msra.mxu0 0.0
    %263 = vmatprep.subr.mxu0 0.0
    %264 = vmatpush1.msra.mxu0 0.0
    %265 = vmatprep.subr.mxu0 0.0
    %266 = vmatpush1.msra.mxu0 0.0
    %267 = vmatprep.subr.mxu0 0.0
    %268 = vmatpush1.msra.mxu0 0.0
    %269 = vmatprep.subr.mxu0 0.0
    %270 = vmatpush1.msra.mxu0 0.0
    %271 = vmatprep.subr.mxu0 0.0
    %272 = vmatpush1.msra.mxu0 0.0
    %273 = vmatprep.subr.mxu0 0.0
    %274 = vmatpush1.msra.mxu0 0.0
    %275 = vmatprep.subr.mxu0 0.0
    %276 = vmatpush1.msra.mxu0 0.0
    %277 = vmatprep.subr.mxu0 0.0
    %278 = vmatpush1.msra.mxu0 0.0
    %279 = vmatprep.subr.mxu0 0.0
    %280 = vmatpush1.msra.mxu0 0.0
    %281 = vmatprep.subr.mxu0 0.0
    %282 = vmatpush1.msra.mxu0 0.0
    %283 = vmatprep.subr.mxu0 0.0
    %284 = vmatpush1.msra.mxu0 0.0
    %285 = vmatprep.subr.mxu0 0.0
    %286 = vmatpush1.msra.mxu0 0.0
    %287 = vmatprep.subr.mxu0 0.0
    %288 = vmatpush1.msra.mxu0 0.0
    %289 = vmatprep.subr.mxu0 0.0
    %290 = vmatpush1.msra.mxu0 0.0
    %291 = vmatprep.subr.mxu0 0.0
    %292 = vmatpush1.msra.mxu0 0.0
    %293 = vmatprep.subr.mxu0 0.0
    %294 = vmatpush1.msra.mxu0 0.0
    %295 = vmatprep.subr.mxu0 0.0
    %296 = vmatpush1.msra.mxu0 0.0
    %297 = vmatprep.subr.mxu0 0.0
    %298 = vmatpush1.msra.mxu0 0.0
    %299 = vmatprep.subr.mxu0 0.0
    %300 = vmatpush1.msra.mxu0 0.0
    %301 = vmatprep.mubr.f32.mxu0 0.0
    %302 = vmatmul.mubr.f32.gmra.mrb[0].mxu0 %v235
    %v303 = vpop.f32.mrb[0].mxu0
    %v304 = vadd.f32 %v232, %v303
    %v305 = vpop.f32.mrb[0].mxu0
    %306 = vdwg.mxu0
    %v307 = vmax.f32 %v304, 0.0
    %vm308 = vcmask 7168
    %309 = vst.msk [vmem:[%s7] sm:$0xff] %vm308, %v307
    // Predicated region
    $region34: #{property_predictor_forward.1} parent=1 // pred_check
      _
    $region35: #{property_predictor_forward.1} parent=1 // pred_check_branch
      %311 = sbr.rel (0) target = $region37
    $region36: #{property_predictor_forward.1} parent=1 // pred_region
      _
    $region37: #{property_predictor_forward.1} parent=1 // pred_fallthru
      _
    // Predicated region
    $region38: #{property_predictor_forward.1} parent=1 // pred_check
      _
    $region39: #{property_predictor_forward.1} parent=1 // pred_check_branch
      %313 = sbr.rel (0) target = $region41
    $region40: #{property_predictor_forward.1} parent=1 // pred_region
      _
    $region41: #{property_predictor_forward.1} parent=1 // pred_fallthru
      _
    %314 = vsyncpa [#allocation4], 1

</llo_original>
